<compile_context>
chip_gen: v5e
topology: v5e:2x2
jax: 0.10.0
libtpu: 0.0.40
codegen_flags: <defaults>
</compile_context>

<pallas_src>
import functools
import math

import jax
import jax.numpy as jnp
from jax.experimental import pallas as pl
from jax.experimental.pallas import tpu as pltpu


def _layernorm(y, gamma, beta, eps=1e-5):
    mu = jnp.mean(y, axis=-1, keepdims=True)
    var = jnp.mean((y - mu) ** 2, axis=-1, keepdims=True)
    return (y - mu) * jax.lax.rsqrt(var + eps) * gamma + beta


def _gelu_exact(x):
    # exact (erf-based) GELU, matching torch.nn.functional.gelu default
    return 0.5 * x * (1.0 + jax.lax.erf(x * (1.0 / math.sqrt(2.0))))


# ---------------- Kernel 1: fused QKV projection (scale folded into q) ----------------
def qkv_kernel(x_ref, wq_ref, wk_ref, wv_ref, q_ref, k_ref, v_ref, *, scale):
    x = x_ref[0].astype(wq_ref.dtype)                              # (tq, D)
    q = jnp.dot(x, wq_ref[...], preferred_element_type=jnp.float32)
    k = jnp.dot(x, wk_ref[...], preferred_element_type=jnp.float32)
    v = jnp.dot(x, wv_ref[...], preferred_element_type=jnp.float32)
    q_ref[0] = (q * scale).astype(q_ref.dtype)                     # fold softmax scale
    k_ref[0] = k.astype(k_ref.dtype)
    v_ref[0] = v.astype(v_ref.dtype)


# ------- Kernel 2: flash attention + out-proj + res + LN1 + GEGLU FF + res + LN2 -------
def fused_attn_ff_kernel(x_ref, q_ref, k_ref, v_ref,
                         wo_ref, bo_ref, g1_ref, b1_ref,
                         wa_ref, ba_ref, wg_ref, bg_ref,
                         w2_ref, b2_ref, g2_ref, b2n_ref,
                         o_ref,
                         m_ref, l_ref, acc_ref, *, approx_recip):
    j = pl.program_id(2)
    nk = pl.num_programs(2)
    cdt = wo_ref.dtype

    @pl.when(j == 0)
    def _():
        m_ref[...] = jnp.full_like(m_ref, -jnp.inf)
        l_ref[...] = jnp.zeros_like(l_ref)
        acc_ref[...] = jnp.zeros_like(acc_ref)

    q = q_ref[0]                                                   # (H, tq, dh), pre-scaled
    k = k_ref[0]                                                   # (H, tk, dh)
    v = v_ref[0]                                                   # (H, tk, dh)

    # Scores for this KV tile, heads batched; contraction on the last dims (no k.T).
    s = jnp.einsum('hqd,hkd->hqk', q, k, preferred_element_type=jnp.float32)

    # Online softmax update (flash style).
    m_prev = m_ref[...]                                            # (H, tq, 1)
    m_new = jnp.maximum(m_prev, jnp.max(s, axis=-1, keepdims=True))
    alpha = jnp.exp(m_prev - m_new)
    p = jnp.exp(s - m_new)                                         # (H, tq, tk)
    l_ref[...] = alpha * l_ref[...] + jnp.sum(p, axis=-1, keepdims=True)
    acc_ref[...] = alpha * acc_ref[...] + jnp.einsum(
        'hqk,hkd->hqd', p.astype(cdt), v, preferred_element_type=jnp.float32)
    m_ref[...] = m_new

    @pl.when(j == nk - 1)
    def _():
        x = x_ref[0]                                               # (tq, D) f32
        if approx_recip:
            inv_l = pl.reciprocal(l_ref[...], approx=True)         # EUP slot
        else:
            inv_l = 1.0 / l_ref[...]
        o = acc_ref[...] * inv_l                                   # (H, tq, dh)

        # Output projection: sum_h o_h @ wo_h  (wo pre-reshaped to (H, dh, D)),
        # written directly lane-dense -- no concatenate, no transpose.
        ctx = jnp.einsum('hqd,hdD->hqD', o.astype(cdt), wo_ref[...],
                         preferred_element_type=jnp.float32)       # (H, tq, D)
        attn = jnp.sum(ctx, axis=0) + bo_ref[...]                  # (tq, D)

        y1 = _layernorm(attn + x, g1_ref[...], b1_ref[...])        # norm1(attn + x)

        # GEGLU feed-forward on the VMEM-resident row tile (no HBM round trip).
        y1c = y1.astype(cdt)
        a = jnp.dot(y1c, wa_ref[...], preferred_element_type=jnp.float32) + ba_ref[...]
        g = jnp.dot(y1c, wg_ref[...], preferred_element_type=jnp.float32) + bg_ref[...]
        hidden = a * _gelu_exact(g)                                # (tq, F)
        ff = jnp.dot(hidden.astype(cdt), w2_ref[...],
                     preferred_element_type=jnp.float32) + b2_ref[...]

        o_ref[0] = _layernorm(ff + y1, g2_ref[...], b2n_ref[...]).astype(o_ref.dtype)


def basic_transformer_block_v2(x, params, *, n_heads, d_head,
                               compute_dtype=jnp.bfloat16, tq=None, tk=None):
    B, N, D = x.shape
    H, dh = n_heads, d_head
    Dh = H * dh
    F = params["ff_w1"].shape[1] // 2
    cdt = jnp.dtype(compute_dtype)
    scale = dh ** -0.5

    tq = min(N, 256) if tq is None else tq
    tk = min(N, 256) if tk is None else tk
    assert N % tq == 0 and N % tk == 0, "TODO(synk): pad/mask ragged sequence tiles"
    nq, nk = N // tq, N // tk

    wq = params["wq"].astype(cdt)
    wk = params["wk"].astype(cdt)
    wv = params["wv"].astype(cdt)

    # ---- Kernel 1: QKV projection (lane-dense (tq, Dh) outputs, bf16 traffic) ----
    q, k, v = pl.pallas_call(
        functools.partial(qkv_kernel, scale=scale),
        out_shape=[jax.ShapeDtypeStruct((B, N, Dh), cdt)] * 3,
        grid=(B, nq),
        in_specs=[
            pl.BlockSpec((1, tq, D), lambda b, i: (b, i, 0)),
            pl.BlockSpec((D, Dh), lambda b, i: (0, 0)),
            pl.BlockSpec((D, Dh), lambda b, i: (0, 0)),
            pl.BlockSpec((D, Dh), lambda b, i: (0, 0)),
        ],
        out_specs=[pl.BlockSpec((1, tq, Dh), lambda b, i: (b, i, 0))] * 3,
        compiler_params=pltpu.CompilerParams(
            dimension_semantics=("parallel", "parallel")),
    )(x, wq, wk, wv)

    # Layout plumbing only (no compute): split heads into their own axis so the
    # attention kernel tiles per-head without sub-128 lane-dim slicing.
    def split_heads(t):
        return t.reshape(B, N, H, dh).transpose(0, 2, 1, 3)        # (B, H, N, dh)
    qh, kh, vh = split_heads(q), split_heads(k), split_heads(v)

    wo_r = params["wo"].reshape(H, dh, D).astype(cdt)
    wa = params["ff_w1"][:, :F].astype(cdt)                        # GEGLU value half
    wg = params["ff_w1"][:, F:].astype(cdt)                        # GEGLU gate half
    ba = params["ff_b1"][:, :F]
    bg = params["ff_b1"][:, F:]
    w2 = params["ff_w2"].astype(cdt)

    const2 = lambda shape: pl.BlockSpec(shape, lambda b, i, j: (0, 0))
    const3 = lambda shape: pl.BlockSpec(shape, lambda b, i, j: (0, 0, 0))

    out = pl.pallas_call(
        functools.partial(fused_attn_ff_kernel,
                          approx_recip=(cdt != jnp.dtype(jnp.float32))),
        out_shape=jax.ShapeDtypeStruct((B, N, D), x.dtype),
        grid=(B, nq, nk),
        in_specs=[
            pl.BlockSpec((1, tq, D), lambda b, i, j: (b, i, 0)),          # x (residual)
            pl.BlockSpec((1, H, tq, dh), lambda b, i, j: (b, 0, i, 0)),   # q (row tile)
            pl.BlockSpec((1, H, tk, dh), lambda b, i, j: (b, 0, j, 0)),   # k (kv tile)
            pl.BlockSpec((1, H, tk, dh), lambda b, i, j: (b, 0, j, 0)),   # v (kv tile)
            const3((H, dh, D)),      # wo, per-head
            const2((1, D)),          # bo
            const2((1, D)),          # ln1 gamma
            const2((1, D)),          # ln1 beta
            const2((D, F)),          # ff w1 value half
            const2((1, F)),          # ff b1 value half
            const2((D, F)),          # ff w1 gate half
            const2((1, F)),          # ff b1 gate half
            const2((F, D)),          # ff w2
            const2((1, D)),          # ff b2
            const2((1, D)),          # ln2 gamma
            const2((1, D)),          # ln2 beta
        ],
        out_specs=pl.BlockSpec((1, tq, D), lambda b, i, j: (b, i, 0)),
        scratch_shapes=[
            pltpu.VMEM((H, tq, 1), jnp.float32),    # running max
            pltpu.VMEM((H, tq, 1), jnp.float32),    # running sum
            pltpu.VMEM((H, tq, dh), jnp.float32),   # attention accumulator
        ],
        compiler_params=pltpu.CompilerParams(
            dimension_semantics=("parallel", "parallel", "arbitrary"),
            vmem_limit_bytes=64 * 1024 * 1024),     # headroom for resident FF weights
    )(x, qh, kh, vh, wo_r, params["bo"], params["ln1_g"], params["ln1_b"],
      wa, ba, wg, bg, w2, params["ff_b2"], params["ln2_g"], params["ln2_b"])

    return out


# ---------------- pure-JAX f32 reference (same math, for sanity check) ----------------
def reference(x, p, *, n_heads, d_head):
    B, N, D = x.shape
    q = x @ p["wq"]; k = x @ p["wk"]; v = x @ p["wv"]
    q = q.reshape(B, N, n_heads, d_head).transpose(0, 2, 1, 3)
    k = k.reshape(B, N, n_heads, d_head).transpose(0, 2, 1, 3)
    v = v.reshape(B, N, n_heads, d_head).transpose(0, 2, 1, 3)
    sim = jnp.einsum("bhid,bhjd->bhij", q, k) * (d_head ** -0.5)
    attn = jax.nn.softmax(sim, axis=-1)
    o = jnp.einsum("bhij,bhjd->bhid", attn, v).transpose(0, 2, 1, 3).reshape(B, N, -1)
    o = o @ p["wo"] + p["bo"][0]
    y = _layernorm(o + x, p["ln1_g"][0], p["ln1_b"][0])
    h = y @ p["ff_w1"] + p["ff_b1"][0]
    inner = p["ff_w2"].shape[0]
    a, gate = h[..., :inner], h[..., inner:]
    hidden = a * _gelu_exact(gate)
    ff = hidden @ p["ff_w2"] + p["ff_b2"][0]
    return _layernorm(ff + y, p["ln2_g"][0], p["ln2_b"][0])


if __name__ == "__main__":
    B, N, dim = 2, 16, 32
    n_heads, d_head = 4, 8
    inner_attn = n_heads * d_head
    inner_ff = 4 * dim

    key = jax.random.PRNGKey(0)
    ks = jax.random.split(key, 10)
    f32 = jnp.float32
    params = {
        "wq": jax.random.normal(ks[0], (dim, inner_attn), f32) * 0.05,
        "wk": jax.random.normal(ks[1], (dim, inner_attn), f32) * 0.05,
        "wv": jax.random.normal(ks[2], (dim, inner_attn), f32) * 0.05,
        "wo": jax.random.normal(ks[3], (inner_attn, dim), f32) * 0.05,
        "bo": jax.random.normal(ks[4], (1, dim), f32) * 0.05,
        "ln1_g": jnp.ones((1, dim), f32),
        "ln1_b": jnp.zeros((1, dim), f32),
        "ff_w1": jax.random.normal(ks[5], (dim, 2 * inner_ff), f32) * 0.05,
        "ff_b1": jax.random.normal(ks[6], (1, 2 * inner_ff), f32) * 0.05,
        "ff_w2": jax.random.normal(ks[7], (inner_ff, dim), f32) * 0.05,
        "ff_b2": jax.random.normal(ks[8], (1, dim), f32) * 0.05,
        "ln2_g": jnp.ones((1, dim), f32),
        "ln2_b": jnp.zeros((1, dim), f32),
    }
    x = jax.random.normal(ks[9], (B, N, dim), f32)

    # bf16 MXU path (production configuration)
    out_bf16 = basic_transformer_block_v2(x, params, n_heads=n_heads, d_head=d_head)
    out_bf16 = jax.block_until_ready(out_bf16)

    # f32 path (tight numerical check of the kernel structure)
    out_f32 = basic_transformer_block_v2(x, params, n_heads=n_heads, d_head=d_head,
                                         compute_dtype=jnp.float32)
    out_f32 = jax.block_until_ready(out_f32)

    ref = reference(x, params, n_heads=n_heads, d_head=d_head)
    assert out_f32.shape == (B, N, dim) and out_bf16.shape == (B, N, dim)
    err32 = float(jnp.max(jnp.abs(out_f32 - ref)))
    err16 = float(jnp.max(jnp.abs(out_bf16 - ref)))
    assert jnp.allclose(out_f32, ref, atol=1e-4, rtol=1e-4), err32
    assert jnp.allclose(out_bf16, ref, atol=3e-2, rtol=3e-2), err16
    print("KERNEL_OK")
</pallas_src>

<mosaic_0001>
module attributes {stable_mosaic.version = 11 : i64} {
  func.func @qkv_kernel(%arg0: i32, %arg1: i32, %arg2: memref<1x16x32xf32, #tpu.memory_space<vmem>>, %arg3: memref<32x32xbf16, #tpu.memory_space<vmem>>, %arg4: memref<32x32xbf16, #tpu.memory_space<vmem>>, %arg5: memref<32x32xbf16, #tpu.memory_space<vmem>>, %arg6: memref<1x16x32xbf16, #tpu.memory_space<vmem>>, %arg7: memref<1x16x32xbf16, #tpu.memory_space<vmem>>, %arg8: memref<1x16x32xbf16, #tpu.memory_space<vmem>>) attributes {dimension_semantics = [#tpu.dimension_semantics<parallel>, #tpu.dimension_semantics<parallel>], iteration_bounds = array<i64: 2, 1>, scalar_prefetch = 0 : i64, scratch_operands = 0 : i64, tpu.core_type = #tpu.core_type<tc>, window_params = [{transform_indices = @transform_0, window_bounds = array<i64: 1, 16, 32>}, {pipeline_mode = #tpu.pipeline_mode<synchronous>, transform_indices = @transform_1, window_bounds = array<i64: 32, 32>}, {pipeline_mode = #tpu.pipeline_mode<synchronous>, transform_indices = @transform_2, window_bounds = array<i64: 32, 32>}, {pipeline_mode = #tpu.pipeline_mode<synchronous>, transform_indices = @transform_3, window_bounds = array<i64: 32, 32>}, {transform_indices = @transform_4, window_bounds = array<i64: 1, 16, 32>}, {transform_indices = @transform_5, window_bounds = array<i64: 1, 16, 32>}, {transform_indices = @transform_6, window_bounds = array<i64: 1, 16, 32>}]} {
    %c0 = arith.constant 0 : index
    %c0_0 = arith.constant 0 : index
    %c0_1 = arith.constant 0 : index
    %0 = vector.load %arg2[%c0, %c0_0, %c0_1] : memref<1x16x32xf32, #tpu.memory_space<vmem>>, vector<1x16x32xf32>
    %1 = vector.shape_cast %0 : vector<1x16x32xf32> to vector<16x32xf32>
    %2 = arith.truncf %1 : vector<16x32xf32> to vector<16x32xbf16>
    %c0_2 = arith.constant 0 : index
    %c0_3 = arith.constant 0 : index
    %3 = vector.load %arg3[%c0_2, %c0_3] : memref<32x32xbf16, #tpu.memory_space<vmem>>, vector<32x32xbf16>
    %cst = arith.constant dense<0.000000e+00> : vector<16x32xf32>
    %4 = tpu.matmul %2, %3, %cst {dimension_numbers = #tpu.dot_dimension_numbers<[1], [0], [0], [1], [0, 0, 1, 1], [], []>} : vector<16x32xbf16>, vector<32x32xbf16>, vector<16x32xf32> -> vector<16x32xf32>
    %c0_4 = arith.constant 0 : index
    %c0_5 = arith.constant 0 : index
    %5 = vector.load %arg4[%c0_4, %c0_5] : memref<32x32xbf16, #tpu.memory_space<vmem>>, vector<32x32xbf16>
    %cst_6 = arith.constant dense<0.000000e+00> : vector<16x32xf32>
    %6 = tpu.matmul %2, %5, %cst_6 {dimension_numbers = #tpu.dot_dimension_numbers<[1], [0], [0], [1], [0, 0, 1, 1], [], []>} : vector<16x32xbf16>, vector<32x32xbf16>, vector<16x32xf32> -> vector<16x32xf32>
    %c0_7 = arith.constant 0 : index
    %c0_8 = arith.constant 0 : index
    %7 = vector.load %arg5[%c0_7, %c0_8] : memref<32x32xbf16, #tpu.memory_space<vmem>>, vector<32x32xbf16>
    %cst_9 = arith.constant dense<0.000000e+00> : vector<16x32xf32>
    %8 = tpu.matmul %2, %7, %cst_9 {dimension_numbers = #tpu.dot_dimension_numbers<[1], [0], [0], [1], [0, 0, 1, 1], [], []>} : vector<16x32xbf16>, vector<32x32xbf16>, vector<16x32xf32> -> vector<16x32xf32>
    %cst_10 = arith.constant 0.353553385 : f32
    %9 = vector.broadcast %cst_10 : f32 to vector<16x32xf32>
    %10 = arith.mulf %4, %9 : vector<16x32xf32>
    %11 = arith.truncf %10 : vector<16x32xf32> to vector<16x32xbf16>
    %c0_11 = arith.constant 0 : index
    %c0_12 = arith.constant 0 : index
    %c0_13 = arith.constant 0 : index
    %12 = vector.load %arg6[%c0_11, %c0_12, %c0_13] : memref<1x16x32xbf16, #tpu.memory_space<vmem>>, vector<1x16x32xbf16>
    %13 = vector.shape_cast %12 : vector<1x16x32xbf16> to vector<16x32xbf16>
    %14 = vector.shape_cast %11 : vector<16x32xbf16> to vector<1x16x32xbf16>
    tpu.vector_store %arg6[%c0_11, %c0_12, %c0_13], %14 {strides = array<i32>} : memref<1x16x32xbf16, #tpu.memory_space<vmem>>, vector<1x16x32xbf16>,
    %15 = arith.truncf %6 : vector<16x32xf32> to vector<16x32xbf16>
    %c0_14 = arith.constant 0 : index
    %c0_15 = arith.constant 0 : index
    %c0_16 = arith.constant 0 : index
    %16 = vector.load %arg7[%c0_14, %c0_15, %c0_16] : memref<1x16x32xbf16, #tpu.memory_space<vmem>>, vector<1x16x32xbf16>
    %17 = vector.shape_cast %16 : vector<1x16x32xbf16> to vector<16x32xbf16>
    %18 = vector.shape_cast %15 : vector<16x32xbf16> to vector<1x16x32xbf16>
    tpu.vector_store %arg7[%c0_14, %c0_15, %c0_16], %18 {strides = array<i32>} : memref<1x16x32xbf16, #tpu.memory_space<vmem>>, vector<1x16x32xbf16>,
    %19 = arith.truncf %8 : vector<16x32xf32> to vector<16x32xbf16>
    %c0_17 = arith.constant 0 : index
    %c0_18 = arith.constant 0 : index
    %c0_19 = arith.constant 0 : index
    %20 = vector.load %arg8[%c0_17, %c0_18, %c0_19] : memref<1x16x32xbf16, #tpu.memory_space<vmem>>, vector<1x16x32xbf16>
    %21 = vector.shape_cast %20 : vector<1x16x32xbf16> to vector<16x32xbf16>
    %22 = vector.shape_cast %19 : vector<16x32xbf16> to vector<1x16x32xbf16>
    tpu.vector_store %arg8[%c0_17, %c0_18, %c0_19], %22 {strides = array<i32>} : memref<1x16x32xbf16, #tpu.memory_space<vmem>>, vector<1x16x32xbf16>,
    return
  }
  func.func @transform_0(%arg0: i32, %arg1: i32) -> (i32, i32, i32) {
    %c0_i32 = arith.constant 0 : i32
    %c0_i32_0 = arith.constant 0 : i32
    return %arg0, %arg1, %c0_i32 : i32, i32, i32
  }
  func.func @transform_1(%arg0: i32, %arg1: i32) -> (i32, i32) {
    %c0_i32 = arith.constant 0 : i32
    %c0_i32_0 = arith.constant 0 : i32
    %c0_i32_1 = arith.constant 0 : i32
    return %c0_i32, %c0_i32_0 : i32, i32
  }
  func.func @transform_2(%arg0: i32, %arg1: i32) -> (i32, i32) {
    %c0_i32 = arith.constant 0 : i32
    %c0_i32_0 = arith.constant 0 : i32
    %c0_i32_1 = arith.constant 0 : i32
    return %c0_i32, %c0_i32_0 : i32, i32
  }
  func.func @transform_3(%arg0: i32, %arg1: i32) -> (i32, i32) {
    %c0_i32 = arith.constant 0 : i32
    %c0_i32_0 = arith.constant 0 : i32
    %c0_i32_1 = arith.constant 0 : i32
    return %c0_i32, %c0_i32_0 : i32, i32
  }
  func.func @transform_4(%arg0: i32, %arg1: i32) -> (i32, i32, i32) {
    %c0_i32 = arith.constant 0 : i32
    %c0_i32_0 = arith.constant 0 : i32
    return %arg0, %arg1, %c0_i32 : i32, i32, i32
  }
  func.func @transform_5(%arg0: i32, %arg1: i32) -> (i32, i32, i32) {
    %c0_i32 = arith.constant 0 : i32
    %c0_i32_0 = arith.constant 0 : i32
    return %arg0, %arg1, %c0_i32 : i32, i32, i32
  }
  func.func @transform_6(%arg0: i32, %arg1: i32) -> (i32, i32, i32) {
    %c0_i32 = arith.constant 0 : i32
    %c0_i32_0 = arith.constant 0 : i32
    return %arg0, %arg1, %c0_i32 : i32, i32, i32
  }
}

</mosaic_0001>

<llo_original>
// kernel: tpu_custom_call.1
$region0: #{tpu_custom_call.1}
  #allocation0 [shape = 'u32[]', space=smem, size = 0x4, offset = 0x4, fixed_abs, tag = 'smem constant byte address 0x4 - core index']
  #allocation1 [shape = 'u32[72,128]{1,0:T(1,128)}', space=vmem, size = 0x9000, scoped, tag = 'internal scratch']
  %s0 = inlined_call_operand.hbm [shape: f32[2,16,32], index: 0, kind: input, shape index: {}]
  %s1 = inlined_call_operand.hbm [shape: bf16[32,32], index: 1, kind: input, shape index: {}]
  %s2 = inlined_call_operand.hbm [shape: bf16[32,32], index: 2, kind: input, shape index: {}]
  %s3 = inlined_call_operand.hbm [shape: bf16[32,32], index: 3, kind: input, shape index: {}]
  %s4 = inlined_call_operand.hbm [shape: bf16[2,16,32], index: 4, kind: output, shape index: {0}]
  %s5 = inlined_call_operand.hbm [shape: bf16[2,16,32], index: 5, kind: output, shape index: {1}]
  %s6 = inlined_call_operand.hbm [shape: bf16[2,16,32], index: 6, kind: output, shape index: {2}]
  %7 = xla_tuple %s4, %s5, %s6
  %s8 = sld [smem:[#allocation0]]
  $region81: #{tpu_custom_call.1} parent=0
    _
  %s10 = ssub.s32 1, %s8
  %s11 = scalar_select 0, %s10, %s8
  $region1: #{tpu_custom_call.1} parent=0
    #allocation2 [shape = 'u8[16384]{0}', space=vmem, size = 0x4000, scoped, tag = 'input window, operand 0']
    #allocation3 [shape = 's32[2]{0}', space=sflag, size = 0x8, scoped, tag = 'scoped memory for tpu_custom_call.1']
    #allocation4 [shape = 's32[2]{0}', space=sflag, size = 0x8, scoped, tag = 'scoped memory for tpu_custom_call.1']
    #allocation5 [shape = 'u8[8192]{0}', space=vmem, size = 0x2000, scoped, tag = 'input window, operand 1, single buffered']
    #allocation6 [shape = 's32[1]{0}', space=sflag, size = 0x4, scoped, tag = 'scoped memory for tpu_custom_call.1']
    #allocation7 [shape = 'u8[8192]{0}', space=vmem, size = 0x2000, scoped, tag = 'input window, operand 2, single buffered']
    #allocation8 [shape = 'u8[8192]{0}', space=vmem, size = 0x2000, scoped, tag = 'input window, operand 3, single buffered']
    #allocation9 [shape = 's32[1]{0}', space=sflag, size = 0x4, scoped, tag = 'scoped memory for tpu_custom_call.1']
    #allocation10 [shape = 'u8[8192]{0}', space=vmem, size = 0x2000, scoped, tag = 'output window, operand 0']
    #allocation11 [shape = 'u8[8192]{0}', space=vmem, size = 0x2000, scoped, tag = 'output window, operand 1']
    #allocation12 [shape = 's32[2]{0}', space=sflag, size = 0x8, scoped, tag = 'scoped memory for tpu_custom_call.1']
    #allocation13 [shape = 'u8[8192]{0}', space=vmem, size = 0x2000, scoped, tag = 'output window, operand 2']
    %12 = vsyncpa [#allocation3], 0
    %s13 = scalar_lea.sflag [#allocation3], 1
    %14 = vsyncpa %s13, 0
    %15 = vsyncpa [#allocation6], 0
    %16 = vsyncpa [#allocation9], 0
    %17 = vsyncpa [#allocation4], 0
    %s18 = scalar_lea.sflag [#allocation4], 1
    %19 = vsyncpa %s18, 0
    %20 = vsyncpa [#allocation12], 0
    %s21 = scalar_lea.sflag [#allocation12], 1
    %22 = vsyncpa %s21, 0
    loop: start=0, step=1, limit=4
    $region2: #{tpu_custom_call.1} parent=1 // loop_pre_header
      _
    $region3: #{tpu_custom_call.1} parent=1 // loop_header
      %s24 = sphi 0, %s28
      %p25 = scmp.ge.s32.totalorder %s24, 4
      %s31 = sphi 0, %s43
      %s32 = sphi 0, %s39
      %s33 = sphi 0, %s31
      %s34 = sphi 0, %s32
      %s35 = sphi 0, %s33
      %s36 = sphi 0, %s34
      %s48 = sphi 0, %s50
      %s51 = sphi 0, %s48
      %s52 = sphi 0, %s51
      %s68 = sphi 0, %s52
      %s72 = sphi 0, %s72
      %s74 = sphi 0, %s72
      %s75 = sphi 0, %s74
      %s89 = sphi 0, %s75
      %s93 = sphi 0, %s93
      %s95 = sphi 0, %s93
      %s96 = sphi 0, %s95
      %s110 = sphi 0, %s96
      %s114 = sphi 0, %s114
      %s116 = sphi 0, %s114
      %s117 = sphi 0, %s116
      %s131 = sphi 0, %s117
      %s139 = sphi 0, %s141
      %s142 = sphi 0, %s139
      %s143 = sphi 0, %s142
      %s159 = sphi 0, %s143
      %s167 = sphi 0, %s169
      %s170 = sphi 0, %s167
      %s171 = sphi 0, %s170
      %s187 = sphi 0, %s171
      %s195 = sphi 0, %s197
      %s198 = sphi 0, %s195
      %s199 = sphi 0, %s198
      %s215 = sphi 0, %s199
    $region4: #{tpu_custom_call.1} parent=1 // loop_header_branch
      %27 = sbr.rel (%p25) target = $region8
    $region5: #{tpu_custom_call.1} parent=1 // loop_body
      %s29 = ssub.s32 %s24, 1
      %s30 = ssub.s32 %s24, 2
      %s37 = sadd.s32 1, %s32
      %p38 = scmp.ge.s32.totalorder %s37, 1
      %s39 = scalar_select %p38, 0, %s37
      %s40 = sadd.s32 1, %s31
      %s41 = scalar_select %p38, %s40, %s31
      %p42 = scmp.ge.s32.totalorder %s41, 2
      %s43 = scalar_select %p42, 0, %s41
      %s44 = ssub.s32 %s31, %s43
      %s45 = ssub.s32 %s32, %s39
      %s46 = sor.u32 %s44, %s45
      %p47 = scmp.eq.s32.totalorder %s46, 0
      %s49 = sadd.s32 %s48, 1
      %s50 = scalar_select %p47, %s48, %s49
      %p53 = pneg %p47
      %p54 = scmp.eq.s32.totalorder %s24, 1
      %p55 = por %p53, %p54
      %p56 = scmp.ne.s32.totalorder %s48, %s51
      %p57 = scmp.eq.s32.totalorder %s24, 0
      %p58 = por %p56, %p57
      %p59 = scmp.ne.s32.totalorder %s48, %s51
      %p60 = scmp.eq.s32.totalorder %s29, 1
      %p61 = por %p59, %p60
      %p62 = scmp.ne.s32.totalorder %s51, %s52
      %p63 = scmp.eq.s32.totalorder %s29, 0
      %p64 = por %p62, %p63
      %p65 = scmp.ne.s32.totalorder %s51, %s52
      %p66 = scmp.eq.s32.totalorder %s30, 1
      %p67 = por %p65, %p66
      %p69 = scmp.ne.s32.totalorder %s52, %s68
      %p70 = scmp.eq.s32.totalorder %s30, 0
      %p71 = por %p69, %p70
      %s73 = sadd.s32 %s72, 1
      %p76 = scmp.eq.s32.totalorder %s24, 1
      %p77 = scmp.ne.s32.totalorder %s72, %s74
      %p78 = scmp.eq.s32.totalorder %s24, 0
      %p79 = por %p77, %p78
      %p80 = scmp.ne.s32.totalorder %s72, %s74
      %p81 = scmp.eq.s32.totalorder %s29, 1
      %p82 = por %p80, %p81
      %p83 = scmp.ne.s32.totalorder %s74, %s75
      %p84 = scmp.eq.s32.totalorder %s29, 0
      %p85 = por %p83, %p84
      %p86 = scmp.ne.s32.totalorder %s74, %s75
      %p87 = scmp.eq.s32.totalorder %s30, 1
      %p88 = por %p86, %p87
      %p90 = scmp.ne.s32.totalorder %s75, %s89
      %p91 = scmp.eq.s32.totalorder %s30, 0
      %p92 = por %p90, %p91
      %s94 = sadd.s32 %s93, 1
      %p97 = scmp.eq.s32.totalorder %s24, 1
      %p98 = scmp.ne.s32.totalorder %s93, %s95
      %p99 = scmp.eq.s32.totalorder %s24, 0
      %p100 = por %p98, %p99
      %p101 = scmp.ne.s32.totalorder %s93, %s95
      %p102 = scmp.eq.s32.totalorder %s29, 1
      %p103 = por %p101, %p102
      %p104 = scmp.ne.s32.totalorder %s95, %s96
      %p105 = scmp.eq.s32.totalorder %s29, 0
      %p106 = por %p104, %p105
      %p107 = scmp.ne.s32.totalorder %s95, %s96
      %p108 = scmp.eq.s32.totalorder %s30, 1
      %p109 = por %p107, %p108
      %p111 = scmp.ne.s32.totalorder %s96, %s110
      %p112 = scmp.eq.s32.totalorder %s30, 0
      %p113 = por %p111, %p112
      %s115 = sadd.s32 %s114, 1
      %p118 = scmp.eq.s32.totalorder %s24, 1
      %p119 = scmp.ne.s32.totalorder %s114, %s116
      %p120 = scmp.eq.s32.totalorder %s24, 0
      %p121 = por %p119, %p120
      %p122 = scmp.ne.s32.totalorder %s114, %s116
      %p123 = scmp.eq.s32.totalorder %s29, 1
      %p124 = por %p122, %p123
      %p125 = scmp.ne.s32.totalorder %s116, %s117
      %p126 = scmp.eq.s32.totalorder %s29, 0
      %p127 = por %p125, %p126
      %p128 = scmp.ne.s32.totalorder %s116, %s117
      %p129 = scmp.eq.s32.totalorder %s30, 1
      %p130 = por %p128, %p129
      %p132 = scmp.ne.s32.totalorder %s117, %s131
      %p133 = scmp.eq.s32.totalorder %s30, 0
      %p134 = por %p132, %p133
      %s135 = ssub.s32 %s31, %s43
      %s136 = ssub.s32 %s32, %s39
      %s137 = sor.u32 %s135, %s136
      %p138 = scmp.eq.s32.totalorder %s137, 0
      %s140 = sadd.s32 %s139, 1
      %s141 = scalar_select %p138, %s139, %s140
      %p144 = pneg %p138
      %p145 = scmp.eq.s32.totalorder %s24, 1
      %p146 = por %p144, %p145
      %p147 = scmp.ne.s32.totalorder %s139, %s142
      %p148 = scmp.eq.s32.totalorder %s24, 0
      %p149 = por %p147, %p148
      %p150 = scmp.ne.s32.totalorder %s139, %s142
      %p151 = scmp.eq.s32.totalorder %s29, 1
      %p152 = por %p150, %p151
      %p153 = scmp.ne.s32.totalorder %s142, %s143
      %p154 = scmp.eq.s32.totalorder %s29, 0
      %p155 = por %p153, %p154
      %p156 = scmp.ne.s32.totalorder %s142, %s143
      %p157 = scmp.eq.s32.totalorder %s30, 1
      %p158 = por %p156, %p157
      %p160 = scmp.ne.s32.totalorder %s143, %s159
      %p161 = scmp.eq.s32.totalorder %s30, 0
      %p162 = por %p160, %p161
      %s163 = ssub.s32 %s31, %s43
      %s164 = ssub.s32 %s32, %s39
      %s165 = sor.u32 %s163, %s164
      %p166 = scmp.eq.s32.totalorder %s165, 0
      %s168 = sadd.s32 %s167, 1
      %s169 = scalar_select %p166, %s167, %s168
      %p172 = pneg %p166
      %p173 = scmp.eq.s32.totalorder %s24, 1
      %p174 = por %p172, %p173
      %p175 = scmp.ne.s32.totalorder %s167, %s170
      %p176 = scmp.eq.s32.totalorder %s24, 0
      %p177 = por %p175, %p176
      %p178 = scmp.ne.s32.totalorder %s167, %s170
      %p179 = scmp.eq.s32.totalorder %s29, 1
      %p180 = por %p178, %p179
      %p181 = scmp.ne.s32.totalorder %s170, %s171
      %p182 = scmp.eq.s32.totalorder %s29, 0
      %p183 = por %p181, %p182
      %p184 = scmp.ne.s32.totalorder %s170, %s171
      %p185 = scmp.eq.s32.totalorder %s30, 1
      %p186 = por %p184, %p185
      %p188 = scmp.ne.s32.totalorder %s171, %s187
      %p189 = scmp.eq.s32.totalorder %s30, 0
      %p190 = por %p188, %p189
      %s191 = ssub.s32 %s31, %s43
      %s192 = ssub.s32 %s32, %s39
      %s193 = sor.u32 %s191, %s192
      %p194 = scmp.eq.s32.totalorder %s193, 0
      %s196 = sadd.s32 %s195, 1
      %s197 = scalar_select %p194, %s195, %s196
      %p200 = pneg %p194
      %p201 = scmp.eq.s32.totalorder %s24, 1
      %p202 = por %p200, %p201
      %p203 = scmp.ne.s32.totalorder %s195, %s198
      %p204 = scmp.eq.s32.totalorder %s24, 0
      %p205 = por %p203, %p204
      %p206 = scmp.ne.s32.totalorder %s195, %s198
      %p207 = scmp.eq.s32.totalorder %s29, 1
      %p208 = por %p206, %p207
      %p209 = scmp.ne.s32.totalorder %s198, %s199
      %p210 = scmp.eq.s32.totalorder %s29, 0
      %p211 = por %p209, %p210
      %p212 = scmp.ne.s32.totalorder %s198, %s199
      %p213 = scmp.eq.s32.totalorder %s30, 1
      %p214 = por %p212, %p213
      %p216 = scmp.ne.s32.totalorder %s199, %s215
      %p217 = scmp.eq.s32.totalorder %s30, 0
      %p218 = por %p216, %p217
      %p219 = scmp.le.s32.totalorder 1, %s24
      %p220 = scmp.lt.s32.totalorder %s24, 3
      %p221 = pnand %p219, %p220
      %p222 = pneg %p221
      // Predicated region
      $region9: #{tpu_custom_call.1} parent=5 // pred_check
        _
      $region10: #{tpu_custom_call.1} parent=5 // pred_check_branch
        %224 = sbr.rel (%p221) target = $region12
      $region11: #{tpu_custom_call.1} parent=5 // pred_region
        %s225 = ssub.s32 %s24, 1
        // Predicated region
        $region13: #{tpu_custom_call.1} parent=11 // pred_check
          %p226 = pneg %p85
        $region14: #{tpu_custom_call.1} parent=11 // pred_check_branch
          %228 = sbr.rel (%p226) target = $region16
        $region15: #{tpu_custom_call.1} parent=11 // pred_region
          %230 = vsyncadd [#allocation6], 0
          %s231 = sshll.u32 %s1, 4
          %s232 = int_to_ptr.hbm [resolvable:$true] %s231
          %s233 = sshll.u32 [#allocation5], 4
          %s234 = int_to_ptr.vmem [resolvable:$true] %s233
          %239 = dma.hbm_to_vmem [thread:$0]  %s232, 256, %s234, [#allocation6], 64, 64, 4
        $region16: #{tpu_custom_call.1} parent=11 // pred_fallthru
          _
        // Predicated region
        $region17: #{tpu_custom_call.1} parent=11 // pred_check
          %p240 = pneg %p106
        $region18: #{tpu_custom_call.1} parent=11 // pred_check_branch
          %242 = sbr.rel (%p240) target = $region20
        $region19: #{tpu_custom_call.1} parent=11 // pred_region
          %244 = vsyncadd [#allocation6], 0
          %s245 = sshll.u32 %s2, 4
          %s246 = int_to_ptr.hbm [resolvable:$true] %s245
          %s247 = sshll.u32 [#allocation7], 4
          %s248 = int_to_ptr.vmem [resolvable:$true] %s247
          %253 = dma.hbm_to_vmem [thread:$0]  %s246, 256, %s248, [#allocation6], 64, 64, 4
        $region20: #{tpu_custom_call.1} parent=11 // pred_fallthru
          _
        // Predicated region
        $region21: #{tpu_custom_call.1} parent=11 // pred_check
          %p254 = pneg %p127
        $region22: #{tpu_custom_call.1} parent=11 // pred_check_branch
          %256 = sbr.rel (%p254) target = $region24
        $region23: #{tpu_custom_call.1} parent=11 // pred_region
          %258 = vsyncadd [#allocation9], 0
          %s259 = sshll.u32 %s3, 4
          %s260 = int_to_ptr.hbm [resolvable:$true] %s259
          %s261 = sshll.u32 [#allocation8], 4
          %s262 = int_to_ptr.vmem [resolvable:$true] %s261
          %267 = dma.hbm_to_vmem [thread:$0]  %s260, 256, %s262, [#allocation9], 64, 64, 4
        $region24: #{tpu_custom_call.1} parent=11 // pred_fallthru
          _
      $region12: #{tpu_custom_call.1} parent=5 // pred_fallthru
        _
      %p268 = scmp.lt.s32.totalorder %s24, 2
      // Predicated region
      $region25: #{tpu_custom_call.1} parent=5 // pred_check
        %p269 = pneg %p268
      $region26: #{tpu_custom_call.1} parent=5 // pred_check_branch
        %271 = sbr.rel (%p269) target = $region28
      $region27: #{tpu_custom_call.1} parent=5 // pred_region
        // Predicated region
        $region29: #{tpu_custom_call.1} parent=27 // pred_check
          %p272 = pneg %p58
        $region30: #{tpu_custom_call.1} parent=27 // pred_check_branch
          %274 = sbr.rel (%p272) target = $region32
        $region31: #{tpu_custom_call.1} parent=27 // pred_region
          %s275 = sand.u32 %s48, 1
          %s276 = scalar_lea.sflag [#allocation3], %s275
          %s277 = sand.u32 %s48, 1
          %s278 = smul.addr %s277, 16
          %s279 = scalar_lea.vmem [#allocation2], %s278
          %s280 = smul.u32 2, %s32
          %282 = vsyncadd %s276, 0
          %s283 = smul.addr %s31, 2
          %s284 = sadd.s32 %s280, %s283
          %s285 = smul.addr %s284, 8
          %s286 = scalar_lea.hbm %s0, %s285
          %s287 = sshll.u32 %s286, 4
          %s288 = int_to_ptr.hbm [resolvable:$true] %s287
          %s289 = sshll.u32 %s279, 4
          %s290 = int_to_ptr.vmem [resolvable:$true] %s289
          %295 = dma.hbm_to_vmem [thread:$0]  %s288, 256, %s290, %s276, 128, 128, 8
        $region32: #{tpu_custom_call.1} parent=27 // pred_fallthru
          _
      $region28: #{tpu_custom_call.1} parent=5 // pred_fallthru
        _
      %p296 = scmp.le.s32.totalorder 1, %s24
      %p297 = scmp.lt.s32.totalorder %s24, 3
      %p298 = pnand %p296, %p297
      %p299 = pneg %p298
      // Predicated region
      $region33: #{tpu_custom_call.1} parent=5 // pred_check
        _
      $region34: #{tpu_custom_call.1} parent=5 // pred_check_branch
        %301 = sbr.rel (%p298) target = $region36
      $region35: #{tpu_custom_call.1} parent=5 // pred_region
        %s302 = ssub.s32 %s24, 1
        %s303 = sand.u32 %s51, 1
        %s304 = scalar_lea.sflag [#allocation3], %s303
        %s305 = sand.u32 %s51, 1
        %s306 = smul.addr %s305, 16
        %s307 = scalar_lea.vmem [#allocation2], %s306
        // Predicated region
        $region37: #{tpu_custom_call.1} parent=35 // pred_check
          %p308 = pneg %p64
        $region38: #{tpu_custom_call.1} parent=35 // pred_check_branch
          %310 = sbr.rel (%p308) target = $region40
        $region39: #{tpu_custom_call.1} parent=35 // pred_region
          %312 = dma.done %s304, 256
        $region40: #{tpu_custom_call.1} parent=35 // pred_fallthru
          _
        // Predicated region
        $region41: #{tpu_custom_call.1} parent=35 // pred_check
          %p313 = pneg %p85
        $region42: #{tpu_custom_call.1} parent=35 // pred_check_branch
          %315 = sbr.rel (%p313) target = $region44
        $region43: #{tpu_custom_call.1} parent=35 // pred_region
          %317 = dma.done [#allocation6], 256
        $region44: #{tpu_custom_call.1} parent=35 // pred_fallthru
          _
        // Predicated region
        $region45: #{tpu_custom_call.1} parent=35 // pred_check
          %p318 = pneg %p106
        $region46: #{tpu_custom_call.1} parent=35 // pred_check_branch
          %320 = sbr.rel (%p318) target = $region48
        $region47: #{tpu_custom_call.1} parent=35 // pred_region
          %322 = dma.done [#allocation6], 256
        $region48: #{tpu_custom_call.1} parent=35 // pred_fallthru
          _
        // Predicated region
        $region49: #{tpu_custom_call.1} parent=35 // pred_check
          %p323 = pneg %p127
        $region50: #{tpu_custom_call.1} parent=35 // pred_check_branch
          %325 = sbr.rel (%p323) target = $region52
        $region51: #{tpu_custom_call.1} parent=35 // pred_region
          %327 = dma.done [#allocation9], 256
        $region52: #{tpu_custom_call.1} parent=35 // pred_fallthru
          _
        %s328 = sand.u32 %s51, 1
        %s329 = scalar_lea.sflag [#allocation3], %s328
        %s330 = sand.u32 %s51, 1
        %s331 = smul.addr %s330, 16
        %s332 = scalar_lea.vmem [#allocation2], %s331
        %p333 = pneg %p64
        %p334 = pneg %p61
        %p335 = pneg %p85
        %p336 = pneg %p82
        %p337 = pneg %p106
        %p338 = pneg %p103
        %p339 = pneg %p127
        %p340 = pneg %p124
        %p341 = pneg %p155
        %p342 = pneg %p152
        %s343 = sand.u32 %s142, 1
        %s344 = scalar_lea.sflag [#allocation4], %s343
        %s345 = sand.u32 %s142, 1
        %s346 = smul.addr %s345, 8
        %s347 = scalar_lea.vmem [#allocation10], %s346
        %p348 = pneg %p183
        %p349 = pneg %p180
        %s350 = sand.u32 %s29, 1
        %s351 = scalar_lea.sflag [#allocation12], %s350
        %s352 = sand.u32 %s170, 1
        %s353 = smul.addr %s352, 8
        %s354 = scalar_lea.vmem [#allocation11], %s353
        %p355 = pneg %p211
        %p356 = pneg %p208
        %s357 = sand.u32 %s29, 1
        %s358 = scalar_lea.sflag [#allocation12], %s357
        %s359 = sand.u32 %s198, 1
        %s360 = smul.addr %s359, 8
        %s361 = scalar_lea.vmem [#allocation13], %s360
        %s362 = smul.u32 2, %s34
        %s363 = smul.u32 2, %s34
        %s364 = smul.u32 2, %s34
        %s365 = smul.u32 2, %s34
        %v367 = vld [vmem:[%s307] sm:$0xff]
        %v368 = vld [vmem:[%s307 + $0x8] sm:$0xff]
        %v369 = vpack.c.bf16 %v368, %v367
        %v370 = vld [vmem:[#allocation5] sm:$0xf]
        %v371 = vld [vmem:[#allocation5 + $0x4] sm:$0xf]
        %v372 = vld [vmem:[#allocation5 + $0x8] sm:$0xf]
        %v373 = vld [vmem:[#allocation5 + $0xc] sm:$0xf]
        %v378 = vunpack.c.l.b16 %v370
        %v379 = vunpack.c.l.b16 %v371
        %v380 = vunpack.c.l.b16 %v372
        %v381 = vunpack.c.l.b16 %v373
        %v382 = vpack.c.b16 %v379, %v378
        %v383 = vpack.c.b16 %v381, %v380
        %vm386 = vcmask 261120
        %v388 = vsel %vm386, %v369, 0
        %390 = vmatpush.bf16.msra.mxu0 0
        %391 = vmatpush.bf16.msra.mxu0 0
        %392 = vmatpush.bf16.msra.mxu0 0
        %393 = vmatpush.bf16.msra.mxu0 0
        %394 = vmatpush.bf16.msra.mxu0 0
        %395 = vmatpush.bf16.msra.mxu0 0
        %396 = vmatpush.bf16.msra.mxu0 %v383
        %397 = vmatpush.bf16.msra.mxu0 %v382
        %398 = vmatmul.bf16.gmra.mxu0 %v388
        %v399 = vpop.f32.mrf.mxu0
        %v400 = vadd.f32 0.0, %v399
        %v401 = vpop.f32.mrf.mxu0
        %v402 = vadd.f32 0.0, %v401
        %403 = vdwg.mxu0
        %v404 = vld [vmem:[#allocation7] sm:$0xf]
        %v405 = vld [vmem:[#allocation7 + $0x4] sm:$0xf]
        %v406 = vld [vmem:[#allocation7 + $0x8] sm:$0xf]
        %v407 = vld [vmem:[#allocation7 + $0xc] sm:$0xf]
        %v412 = vunpack.c.l.b16 %v404
        %v413 = vunpack.c.l.b16 %v405
        %v414 = vunpack.c.l.b16 %v406
        %v415 = vunpack.c.l.b16 %v407
        %v416 = vpack.c.b16 %v413, %v412
        %v417 = vpack.c.b16 %v415, %v414
        %420 = vmatpush.bf16.msra.mxu0 0
        %421 = vmatpush.bf16.msra.mxu0 0
        %422 = vmatpush.bf16.msra.mxu0 0
        %423 = vmatpush.bf16.msra.mxu0 0
        %424 = vmatpush.bf16.msra.mxu0 0
        %425 = vmatpush.bf16.msra.mxu0 0
        %426 = vmatpush.bf16.msra.mxu0 %v417
        %427 = vmatpush.bf16.msra.mxu0 %v416
        %428 = vmatmul.bf16.gmra.mxu0 %v388
        %v429 = vpop.f32.mrf.mxu0
        %v430 = vadd.f32 0.0, %v429
        %v431 = vpop.f32.mrf.mxu0
        %v432 = vadd.f32 0.0, %v431
        %433 = vdwg.mxu0
        %v434 = vld [vmem:[#allocation8] sm:$0xf]
        %v435 = vld [vmem:[#allocation8 + $0x4] sm:$0xf]
        %v436 = vld [vmem:[#allocation8 + $0x8] sm:$0xf]
        %v437 = vld [vmem:[#allocation8 + $0xc] sm:$0xf]
        %v442 = vunpack.c.l.b16 %v434
        %v443 = vunpack.c.l.b16 %v435
        %v444 = vunpack.c.l.b16 %v436
        %v445 = vunpack.c.l.b16 %v437
        %v446 = vpack.c.b16 %v443, %v442
        %v447 = vpack.c.b16 %v445, %v444
        %450 = vmatpush.bf16.msra.mxu0 0
        %451 = vmatpush.bf16.msra.mxu0 0
        %452 = vmatpush.bf16.msra.mxu0 0
        %453 = vmatpush.bf16.msra.mxu0 0
        %454 = vmatpush.bf16.msra.mxu0 0
        %455 = vmatpush.bf16.msra.mxu0 0
        %456 = vmatpush.bf16.msra.mxu0 %v447
        %457 = vmatpush.bf16.msra.mxu0 %v446
        %458 = vmatmul.bf16.gmra.mxu0 %v388
        %v459 = vpop.f32.mrf.mxu0
        %v460 = vadd.f32 0.0, %v459
        %v461 = vpop.f32.mrf.mxu0
        %v462 = vadd.f32 0.0, %v461
        %463 = vdwg.mxu0
        %v464 = vmul.f32 %v400, 0.35355338
        %v465 = vmul.f32 %v402, 0.35355338
        %v466 = vpack.c.bf16 %v464, %v464
        %v467 = vpack.c.bf16 %v465, %v465
        %vm468 = vcmask 257024
        %469 = vst.msk [vmem:[%s347] sm:$0xf] %vm468, %v466
        %470 = vst.msk [vmem:[%s347 + $0x4] sm:$0xf] %vm468, %v467
        %v471 = vpack.c.bf16 %v430, %v430
        %v472 = vpack.c.bf16 %v432, %v432
        %473 = vst.msk [vmem:[%s354] sm:$0xf] %vm468, %v471
        %474 = vst.msk [vmem:[%s354 + $0x4] sm:$0xf] %vm468, %v472
        %v475 = vpack.c.bf16 %v460, %v460
        %v476 = vpack.c.bf16 %v462, %v462
        %477 = vst.msk [vmem:[%s361] sm:$0xf] %vm468, %v475
        %478 = vst.msk [vmem:[%s361 + $0x4] sm:$0xf] %vm468, %v476
        %s479 = sand.u32 %s142, 1
        %s480 = scalar_lea.sflag [#allocation4], %s479
        %s481 = sand.u32 %s142, 1
        %s482 = smul.addr %s481, 8
        %s483 = scalar_lea.vmem [#allocation10], %s482
        %s484 = sand.u32 %s29, 1
        %s485 = scalar_lea.sflag [#allocation12], %s484
        %s486 = sand.u32 %s170, 1
        %s487 = smul.addr %s486, 8
        %s488 = scalar_lea.vmem [#allocation11], %s487
        %s489 = sand.u32 %s29, 1
        %s490 = scalar_lea.sflag [#allocation12], %s489
        %s491 = sand.u32 %s198, 1
        %s492 = smul.addr %s491, 8
        %s493 = scalar_lea.vmem [#allocation13], %s492
        // Predicated region
        $region53: #{tpu_custom_call.1} parent=35 // pred_check
          %p494 = pneg %p152
        $region54: #{tpu_custom_call.1} parent=35 // pred_check_branch
          %496 = sbr.rel (%p494) target = $region56
        $region55: #{tpu_custom_call.1} parent=35 // pred_region
          %s497 = smul.u32 2, %s34
          %499 = vsyncadd %s480, 0
          %s500 = smul.addr %s33, 2
          %s501 = sadd.s32 %s497, %s500
          %s502 = smul.addr %s501, 4
          %s503 = scalar_lea.hbm %s4, %s502
          %s504 = sshll.u32 %s483, 4
          %s505 = int_to_ptr.vmem [resolvable:$true] %s504
          %s506 = sshll.u32 %s503, 4
          %s507 = int_to_ptr.hbm [resolvable:$true] %s506
          %512 = dma.vmem_to_hbm [thread:$0]  %s505, 128, %s507, %s480, 64, 64, 4
        $region56: #{tpu_custom_call.1} parent=35 // pred_fallthru
          _
        // Predicated region
        $region57: #{tpu_custom_call.1} parent=35 // pred_check
          %p513 = pneg %p180
        $region58: #{tpu_custom_call.1} parent=35 // pred_check_branch
          %515 = sbr.rel (%p513) target = $region60
        $region59: #{tpu_custom_call.1} parent=35 // pred_region
          %s516 = smul.u32 2, %s34
          %518 = vsyncadd %s485, 0
          %s519 = smul.addr %s33, 2
          %s520 = sadd.s32 %s516, %s519
          %s521 = smul.addr %s520, 4
          %s522 = scalar_lea.hbm %s5, %s521
          %s523 = sshll.u32 %s488, 4
          %s524 = int_to_ptr.vmem [resolvable:$true] %s523
          %s525 = sshll.u32 %s522, 4
          %s526 = int_to_ptr.hbm [resolvable:$true] %s525
          %531 = dma.vmem_to_hbm [thread:$0]  %s524, 128, %s526, %s485, 64, 64, 4
        $region60: #{tpu_custom_call.1} parent=35 // pred_fallthru
          _
        // Predicated region
        $region61: #{tpu_custom_call.1} parent=35 // pred_check
          %p532 = pneg %p208
        $region62: #{tpu_custom_call.1} parent=35 // pred_check_branch
          %534 = sbr.rel (%p532) target = $region64
        $region63: #{tpu_custom_call.1} parent=35 // pred_region
          %s535 = smul.u32 2, %s34
          %537 = vsyncadd %s490, 0
          %s538 = smul.addr %s33, 2
          %s539 = sadd.s32 %s535, %s538
          %s540 = smul.addr %s539, 4
          %s541 = scalar_lea.hbm %s6, %s540
          %s542 = sshll.u32 %s493, 4
          %s543 = int_to_ptr.vmem [resolvable:$true] %s542
          %s544 = sshll.u32 %s541, 4
          %s545 = int_to_ptr.hbm [resolvable:$true] %s544
          %550 = dma.vmem_to_hbm [thread:$0]  %s543, 128, %s545, %s490, 64, 64, 4
        $region64: #{tpu_custom_call.1} parent=35 // pred_fallthru
          _
      $region36: #{tpu_custom_call.1} parent=5 // pred_fallthru
        _
      %p551 = scmp.le.s32.totalorder 2, %s24
      // Predicated region
      $region65: #{tpu_custom_call.1} parent=5 // pred_check
        %p552 = pneg %p551
      $region66: #{tpu_custom_call.1} parent=5 // pred_check_branch
        %554 = sbr.rel (%p552) target = $region68
      $region67: #{tpu_custom_call.1} parent=5 // pred_region
        %s555 = ssub.s32 %s24, 2
        // Predicated region
        $region69: #{tpu_custom_call.1} parent=67 // pred_check
          %p556 = pneg %p158
        $region70: #{tpu_custom_call.1} parent=67 // pred_check_branch
          %558 = sbr.rel (%p556) target = $region72
        $region71: #{tpu_custom_call.1} parent=67 // pred_region
          %s559 = sand.u32 %s143, 1
          %s560 = scalar_lea.sflag [#allocation4], %s559
          %s561 = sand.u32 %s143, 1
          %s562 = smul.addr %s561, 8
          %s563 = scalar_lea.vmem [#allocation10], %s562
          %565 = dma.done %s560, 128
        $region72: #{tpu_custom_call.1} parent=67 // pred_fallthru
          _
        // Predicated region
        $region73: #{tpu_custom_call.1} parent=67 // pred_check
          %p566 = pneg %p186
        $region74: #{tpu_custom_call.1} parent=67 // pred_check_branch
          %568 = sbr.rel (%p566) target = $region76
        $region75: #{tpu_custom_call.1} parent=67 // pred_region
          %s569 = sand.u32 %s30, 1
          %s570 = scalar_lea.sflag [#allocation12], %s569
          %s571 = sand.u32 %s171, 1
          %s572 = smul.addr %s571, 8
          %s573 = scalar_lea.vmem [#allocation11], %s572
          %575 = dma.done %s570, 128
        $region76: #{tpu_custom_call.1} parent=67 // pred_fallthru
          _
        // Predicated region
        $region77: #{tpu_custom_call.1} parent=67 // pred_check
          %p576 = pneg %p214
        $region78: #{tpu_custom_call.1} parent=67 // pred_check_branch
          %578 = sbr.rel (%p576) target = $region80
        $region79: #{tpu_custom_call.1} parent=67 // pred_region
          %s579 = sand.u32 %s30, 1
          %s580 = scalar_lea.sflag [#allocation12], %s579
          %s581 = sand.u32 %s199, 1
          %s582 = smul.addr %s581, 8
          %s583 = scalar_lea.vmem [#allocation13], %s582
          %585 = dma.done %s580, 128
        $region80: #{tpu_custom_call.1} parent=67 // pred_fallthru
          _
      $region68: #{tpu_custom_call.1} parent=5 // pred_fallthru
        _
    $region6: #{tpu_custom_call.1} parent=1 // loop_footer
      %s28 = sadd.s32 1, %s24
    $region7: #{tpu_custom_call.1} parent=1 // loop_footer_branch
      %23 = sbr.rel target = $region3
    $region8: #{tpu_custom_call.1} parent=1 // loop_exit
      _
    %586 = vsyncpa [#allocation3], 1
    %s587 = scalar_lea.sflag [#allocation3], 1
    %588 = vsyncpa %s587, 1
    %589 = vsyncpa [#allocation6], 1
    %590 = vsyncpa [#allocation9], 1
    %591 = vsyncpa [#allocation4], 1
    %s592 = scalar_lea.sflag [#allocation4], 1
    %593 = vsyncpa %s592, 1
    %594 = vsyncpa [#allocation12], 1
    %s595 = scalar_lea.sflag [#allocation12], 1
    %596 = vsyncpa %s595, 1

</llo_original>
